<compile_context>
chip_gen: v5e
topology: v5e:2x2
jax: 0.10.0
libtpu: 0.0.40
codegen_flags: <defaults>
</compile_context>

<pallas_src>
import functools

import jax
import jax.numpy as jnp
import numpy as np
from jax.experimental import pallas as pl
from jax.experimental.pallas import tpu as pltpu

_LANE = 128


def _choose_tiling(n, max_tile, min_steps):
    """tile_n multiple of 128, tile_n <= max_tile, grid >= min_steps."""
    n_q = pl.cdiv(max(n, 1), _LANE)                        # 128-row quanta needed
    steps = max(min_steps, pl.cdiv(n_q * _LANE, max_tile))
    tile_q = pl.cdiv(n_q, steps)
    tile_n = tile_q * _LANE
    n_pad = steps * tile_n
    return tile_n, n_pad, steps


def prepare_params(params):
    """One-time param prep (hoisted out of the per-call path).

    params: flat f32 list [W0,b0, ..., W4,b4, Wf1,bf1, Wf2,bf2], weights in
    PyTorch (out_features, in_features) layout, 1-D biases, BN already folded.
    Returns (bf16 weight tuple, packed (rows,1) f32 bias array, static slices).
    """
    weights = tuple(params[2 * i].astype(jnp.bfloat16) for i in range(7))
    biases = [params[2 * i + 1] for i in range(7)]
    slices = []
    off = 0
    for b in biases:
        d = int(b.shape[0])
        slices.append((off, d))
        off += ((d + 7) // 8) * 8                          # sublane-aligned offsets
    rows = max(8, off)
    packed = jnp.zeros((rows, 1), jnp.float32)
    for (o, d), b in zip(slices, biases):
        packed = packed.at[o:o + d, 0].set(b.astype(jnp.float32))
    return weights, packed, tuple(slices)


def _build_kernel(num_weights, bias_slices):
    def kernel(x_ref, *refs):
        w_refs = refs[:num_weights]
        b_ref = refs[num_weights]
        o_ref = refs[num_weights + 1]

        b_all = b_ref[...]                                 # (rows, 1) f32
        h = x_ref[...]                                     # (in_dim, tile_n) bf16

        # 5 "kite" layers: Linear (+ folded BN) -> ReLU (Dropout = identity, eval)
        for li in range(5):
            off, d = bias_slices[li]
            y = jnp.dot(w_refs[li][...], h, preferred_element_type=jnp.float32)
            h = jnp.maximum(y + b_all[off:off + d, :], 0.0).astype(jnp.bfloat16)

        # head: relu(fc1(.)), then fc2(.)
        off, d = bias_slices[5]
        y = jnp.dot(w_refs[5][...], h, preferred_element_type=jnp.float32)
        h = jnp.maximum(y + b_all[off:off + d, :], 0.0).astype(jnp.bfloat16)

        off, d = bias_slices[6]
        y = jnp.dot(w_refs[6][...], h, preferred_element_type=jnp.float32)
        o_ref[...] = y + b_all[off:off + d, :]             # (out_dim, tile_n) f32

    return kernel


@functools.partial(jax.jit,
                   static_argnames=("bias_slices", "max_tile", "min_steps"))
def kitenet_forward(x, weights, bias_packed, *, bias_slices,
                    max_tile=8192, min_steps=4):
    n, in_dim = x.shape
    out_dim = weights[-1].shape[0]
    tile_n, n_pad, grid = _choose_tiling(n, max_tile, min_steps)

    if n_pad != n:
        x = jnp.pad(x, ((0, n_pad - n), (0, 0)))
    # Stream the input feature-major and in bf16: one fused transpose+convert in
    # the jitted wrapper; lane-dense (in_dim, tile_n) blocks inside the kernel.
    x_t = x.T.astype(jnp.bfloat16)                         # (in_dim, n_pad)

    def resident(p):                                       # whole array, every step
        return pl.BlockSpec(p.shape, lambda i: (0, 0))

    in_specs = [pl.BlockSpec((in_dim, tile_n), lambda i: (0, i))]
    in_specs += [resident(w) for w in weights]
    in_specs += [resident(bias_packed)]

    out_t = pl.pallas_call(
        _build_kernel(len(weights), bias_slices),
        out_shape=jax.ShapeDtypeStruct((out_dim, n_pad), jnp.float32),
        grid=(grid,),
        in_specs=in_specs,
        out_specs=pl.BlockSpec((out_dim, tile_n), lambda i: (0, i)),
        compiler_params=pltpu.CompilerParams(
            dimension_semantics=("parallel",),
            vmem_limit_bytes=48 * 1024 * 1024),
    )(x_t, *weights, bias_packed)

    return out_t.T[:n]                                     # back to (n, out_dim)


def make_params(key, in_dim, hidden_dim, out_dim):
    """KiteNet params (eval mode) with BatchNorm folded into each Linear.

    Weights in PyTorch (out_features, in_features) layout; biases 1-D.
    """
    dims = [
        (in_dim, hidden_dim // 4),
        (hidden_dim // 4, hidden_dim // 2),
        (hidden_dim // 2, hidden_dim),
        (hidden_dim, hidden_dim // 2),
        (hidden_dim // 2, in_dim),
    ]
    eps = 1e-5
    params = []
    for (din, dout) in dims:
        key, k1, k2, k3, k4, k5, k6 = jax.random.split(key, 7)
        w = jax.random.normal(k1, (dout, din), jnp.float32) * 0.1
        b = jax.random.normal(k2, (dout,), jnp.float32) * 0.05
        gamma = 1.0 + 0.1 * jax.random.normal(k3, (dout,), jnp.float32)
        beta = 0.1 * jax.random.normal(k4, (dout,), jnp.float32)
        run_mean = 0.1 * jax.random.normal(k5, (dout,), jnp.float32)
        run_var = jnp.abs(1.0 + 0.1 * jax.random.normal(k6, (dout,), jnp.float32))
        scale = gamma / jnp.sqrt(run_var + eps)
        shift = beta - run_mean * scale
        params += [w * scale[:, None], b * scale + shift]

    mid = (in_dim + out_dim) // 2
    key, k1, k2, k3, k4 = jax.random.split(key, 5)
    params += [jax.random.normal(k1, (mid, in_dim), jnp.float32) * 0.1,
               jax.random.normal(k2, (mid,), jnp.float32) * 0.05,
               jax.random.normal(k3, (out_dim, mid), jnp.float32) * 0.1,
               jax.random.normal(k4, (out_dim,), jnp.float32) * 0.05]
    return params


def reference_forward(x, params):
    """Pure-JAX f32 reference with identical (eval-mode, folded-BN) semantics."""
    h = x
    for i in range(5):
        w, c = params[2 * i], params[2 * i + 1]
        h = jnp.maximum(h @ w.T + c, 0.0)
    wf1, bf1, wf2, bf2 = params[10:14]
    h = jnp.maximum(h @ wf1.T + bf1, 0.0)
    return h @ wf2.T + bf2


if __name__ == "__main__":
    in_dim, hidden_dim, out_dim = 16, 32, 8
    batch = 100            # ragged vs 128-row tiles -> exercises padding + 4-step grid

    key = jax.random.PRNGKey(0)
    key, kx = jax.random.split(key)
    x = jax.random.normal(kx, (batch, in_dim), jnp.float32)
    params = make_params(key, in_dim, hidden_dim, out_dim)

    # Hoisted, one-time bf16 weight prep + bias packing (not in the per-call path).
    weights, bias_packed, bias_slices = prepare_params(params)

    out = kitenet_forward(x, weights, bias_packed, bias_slices=bias_slices)
    out = jax.block_until_ready(out)

    ref = jax.block_until_ready(reference_forward(x, params))
    assert out.shape == (batch, out_dim)
    # bf16 weights/activations on the MXU -> relaxed tolerance vs f32 reference.
    np.testing.assert_allclose(np.asarray(out), np.asarray(ref), rtol=2e-2, atol=5e-3)

    print("KERNEL_OK")
</pallas_src>

<mosaic_0001>
module attributes {stable_mosaic.version = 11 : i64} {
  func.func @kernel(%arg0: i32, %arg1: memref<16x128xbf16, #tpu.memory_space<vmem>>, %arg2: memref<8x16xbf16, #tpu.memory_space<vmem>>, %arg3: memref<16x8xbf16, #tpu.memory_space<vmem>>, %arg4: memref<32x16xbf16, #tpu.memory_space<vmem>>, %arg5: memref<16x32xbf16, #tpu.memory_space<vmem>>, %arg6: memref<16x16xbf16, #tpu.memory_space<vmem>>, %arg7: memref<12x16xbf16, #tpu.memory_space<vmem>>, %arg8: memref<8x12xbf16, #tpu.memory_space<vmem>>, %arg9: memref<112x1xf32, #tpu.memory_space<vmem>>, %arg10: memref<8x128xf32, #tpu.memory_space<vmem>>) attributes {dimension_semantics = [#tpu.dimension_semantics<parallel>], iteration_bounds = array<i64: 4>, scalar_prefetch = 0 : i64, scratch_operands = 0 : i64, tpu.core_type = #tpu.core_type<tc>, window_params = [{transform_indices = @transform_0, window_bounds = array<i64: 16, 128>}, {pipeline_mode = #tpu.pipeline_mode<synchronous>, transform_indices = @transform_1, window_bounds = array<i64: 8, 16>}, {pipeline_mode = #tpu.pipeline_mode<synchronous>, transform_indices = @transform_2, window_bounds = array<i64: 16, 8>}, {pipeline_mode = #tpu.pipeline_mode<synchronous>, transform_indices = @transform_3, window_bounds = array<i64: 32, 16>}, {pipeline_mode = #tpu.pipeline_mode<synchronous>, transform_indices = @transform_4, window_bounds = array<i64: 16, 32>}, {pipeline_mode = #tpu.pipeline_mode<synchronous>, transform_indices = @transform_5, window_bounds = array<i64: 16, 16>}, {pipeline_mode = #tpu.pipeline_mode<synchronous>, transform_indices = @transform_6, window_bounds = array<i64: 12, 16>}, {pipeline_mode = #tpu.pipeline_mode<synchronous>, transform_indices = @transform_7, window_bounds = array<i64: 8, 12>}, {pipeline_mode = #tpu.pipeline_mode<synchronous>, transform_indices = @transform_8, window_bounds = array<i64: 112, 1>}, {transform_indices = @transform_9, window_bounds = array<i64: 8, 128>}]} {
    %c0 = arith.constant 0 : index
    %c0_0 = arith.constant 0 : index
    %0 = vector.load %arg9[%c0, %c0_0] : memref<112x1xf32, #tpu.memory_space<vmem>>, vector<112x1xf32>
    %c0_1 = arith.constant 0 : index
    %c0_2 = arith.constant 0 : index
    %1 = vector.load %arg1[%c0_1, %c0_2] : memref<16x128xbf16, #tpu.memory_space<vmem>>, vector<16x128xbf16>
    %c0_3 = arith.constant 0 : index
    %c0_4 = arith.constant 0 : index
    %2 = vector.load %arg2[%c0_3, %c0_4] : memref<8x16xbf16, #tpu.memory_space<vmem>>, vector<8x16xbf16>
    %cst = arith.constant dense<0.000000e+00> : vector<8x128xf32>
    %3 = tpu.matmul %2, %1, %cst {dimension_numbers = #tpu.dot_dimension_numbers<[1], [0], [0], [1], [0, 0, 1, 1], [], []>} : vector<8x16xbf16>, vector<16x128xbf16>, vector<8x128xf32> -> vector<8x128xf32>
    %4 = vector.extract_strided_slice %0 {offsets = [0, 0], sizes = [8, 1], strides = [1, 1]} : vector<112x1xf32> to vector<8x1xf32>
    %5 = vector.broadcast %4 : vector<8x1xf32> to vector<8x128xf32>
    %6 = arith.addf %3, %5 : vector<8x128xf32>
    %cst_5 = arith.constant 0.000000e+00 : f32
    %7 = vector.broadcast %cst_5 : f32 to vector<8x128xf32>
    %8 = arith.maximumf %6, %7 : vector<8x128xf32>
    %9 = arith.truncf %8 : vector<8x128xf32> to vector<8x128xbf16>
    %c0_6 = arith.constant 0 : index
    %c0_7 = arith.constant 0 : index
    %10 = vector.load %arg3[%c0_6, %c0_7] : memref<16x8xbf16, #tpu.memory_space<vmem>>, vector<16x8xbf16>
    %cst_8 = arith.constant dense<0.000000e+00> : vector<16x128xf32>
    %11 = tpu.matmul %10, %9, %cst_8 {dimension_numbers = #tpu.dot_dimension_numbers<[1], [0], [0], [1], [0, 0, 1, 1], [], []>} : vector<16x8xbf16>, vector<8x128xbf16>, vector<16x128xf32> -> vector<16x128xf32>
    %12 = vector.extract_strided_slice %0 {offsets = [8, 0], sizes = [16, 1], strides = [1, 1]} : vector<112x1xf32> to vector<16x1xf32>
    %13 = vector.broadcast %12 : vector<16x1xf32> to vector<16x128xf32>
    %14 = arith.addf %11, %13 : vector<16x128xf32>
    %cst_9 = arith.constant 0.000000e+00 : f32
    %15 = vector.broadcast %cst_9 : f32 to vector<16x128xf32>
    %16 = arith.maximumf %14, %15 : vector<16x128xf32>
    %17 = arith.truncf %16 : vector<16x128xf32> to vector<16x128xbf16>
    %c0_10 = arith.constant 0 : index
    %c0_11 = arith.constant 0 : index
    %18 = vector.load %arg4[%c0_10, %c0_11] : memref<32x16xbf16, #tpu.memory_space<vmem>>, vector<32x16xbf16>
    %cst_12 = arith.constant dense<0.000000e+00> : vector<32x128xf32>
    %19 = tpu.matmul %18, %17, %cst_12 {dimension_numbers = #tpu.dot_dimension_numbers<[1], [0], [0], [1], [0, 0, 1, 1], [], []>} : vector<32x16xbf16>, vector<16x128xbf16>, vector<32x128xf32> -> vector<32x128xf32>
    %20 = vector.extract_strided_slice %0 {offsets = [24, 0], sizes = [32, 1], strides = [1, 1]} : vector<112x1xf32> to vector<32x1xf32>
    %21 = vector.broadcast %20 : vector<32x1xf32> to vector<32x128xf32>
    %22 = arith.addf %19, %21 : vector<32x128xf32>
    %cst_13 = arith.constant 0.000000e+00 : f32
    %23 = vector.broadcast %cst_13 : f32 to vector<32x128xf32>
    %24 = arith.maximumf %22, %23 : vector<32x128xf32>
    %25 = arith.truncf %24 : vector<32x128xf32> to vector<32x128xbf16>
    %c0_14 = arith.constant 0 : index
    %c0_15 = arith.constant 0 : index
    %26 = vector.load %arg5[%c0_14, %c0_15] : memref<16x32xbf16, #tpu.memory_space<vmem>>, vector<16x32xbf16>
    %cst_16 = arith.constant dense<0.000000e+00> : vector<16x128xf32>
    %27 = tpu.matmul %26, %25, %cst_16 {dimension_numbers = #tpu.dot_dimension_numbers<[1], [0], [0], [1], [0, 0, 1, 1], [], []>} : vector<16x32xbf16>, vector<32x128xbf16>, vector<16x128xf32> -> vector<16x128xf32>
    %28 = vector.extract_strided_slice %0 {offsets = [56, 0], sizes = [16, 1], strides = [1, 1]} : vector<112x1xf32> to vector<16x1xf32>
    %29 = vector.broadcast %28 : vector<16x1xf32> to vector<16x128xf32>
    %30 = arith.addf %27, %29 : vector<16x128xf32>
    %cst_17 = arith.constant 0.000000e+00 : f32
    %31 = vector.broadcast %cst_17 : f32 to vector<16x128xf32>
    %32 = arith.maximumf %30, %31 : vector<16x128xf32>
    %33 = arith.truncf %32 : vector<16x128xf32> to vector<16x128xbf16>
    %c0_18 = arith.constant 0 : index
    %c0_19 = arith.constant 0 : index
    %34 = vector.load %arg6[%c0_18, %c0_19] : memref<16x16xbf16, #tpu.memory_space<vmem>>, vector<16x16xbf16>
    %cst_20 = arith.constant dense<0.000000e+00> : vector<16x128xf32>
    %35 = tpu.matmul %34, %33, %cst_20 {dimension_numbers = #tpu.dot_dimension_numbers<[1], [0], [0], [1], [0, 0, 1, 1], [], []>} : vector<16x16xbf16>, vector<16x128xbf16>, vector<16x128xf32> -> vector<16x128xf32>
    %36 = vector.extract_strided_slice %0 {offsets = [72, 0], sizes = [16, 1], strides = [1, 1]} : vector<112x1xf32> to vector<16x1xf32>
    %37 = vector.broadcast %36 : vector<16x1xf32> to vector<16x128xf32>
    %38 = arith.addf %35, %37 : vector<16x128xf32>
    %cst_21 = arith.constant 0.000000e+00 : f32
    %39 = vector.broadcast %cst_21 : f32 to vector<16x128xf32>
    %40 = arith.maximumf %38, %39 : vector<16x128xf32>
    %41 = arith.truncf %40 : vector<16x128xf32> to vector<16x128xbf16>
    %c0_22 = arith.constant 0 : index
    %c0_23 = arith.constant 0 : index
    %42 = vector.load %arg7[%c0_22, %c0_23] : memref<12x16xbf16, #tpu.memory_space<vmem>>, vector<12x16xbf16>
    %cst_24 = arith.constant dense<0.000000e+00> : vector<12x128xf32>
    %43 = tpu.matmul %42, %41, %cst_24 {dimension_numbers = #tpu.dot_dimension_numbers<[1], [0], [0], [1], [0, 0, 1, 1], [], []>} : vector<12x16xbf16>, vector<16x128xbf16>, vector<12x128xf32> -> vector<12x128xf32>
    %44 = vector.extract_strided_slice %0 {offsets = [88, 0], sizes = [12, 1], strides = [1, 1]} : vector<112x1xf32> to vector<12x1xf32>
    %45 = vector.broadcast %44 : vector<12x1xf32> to vector<12x128xf32>
    %46 = arith.addf %43, %45 : vector<12x128xf32>
    %cst_25 = arith.constant 0.000000e+00 : f32
    %47 = vector.broadcast %cst_25 : f32 to vector<12x128xf32>
    %48 = arith.maximumf %46, %47 : vector<12x128xf32>
    %49 = arith.truncf %48 : vector<12x128xf32> to vector<12x128xbf16>
    %c0_26 = arith.constant 0 : index
    %c0_27 = arith.constant 0 : index
    %50 = vector.load %arg8[%c0_26, %c0_27] : memref<8x12xbf16, #tpu.memory_space<vmem>>, vector<8x12xbf16>
    %cst_28 = arith.constant dense<0.000000e+00> : vector<8x128xf32>
    %51 = tpu.matmul %50, %49, %cst_28 {dimension_numbers = #tpu.dot_dimension_numbers<[1], [0], [0], [1], [0, 0, 1, 1], [], []>} : vector<8x12xbf16>, vector<12x128xbf16>, vector<8x128xf32> -> vector<8x128xf32>
    %52 = vector.extract_strided_slice %0 {offsets = [104, 0], sizes = [8, 1], strides = [1, 1]} : vector<112x1xf32> to vector<8x1xf32>
    %53 = vector.broadcast %52 : vector<8x1xf32> to vector<8x128xf32>
    %54 = arith.addf %51, %53 : vector<8x128xf32>
    %c0_29 = arith.constant 0 : index
    %c0_30 = arith.constant 0 : index
    %55 = vector.load %arg10[%c0_29, %c0_30] : memref<8x128xf32, #tpu.memory_space<vmem>>, vector<8x128xf32>
    tpu.vector_store %arg10[%c0_29, %c0_30], %54 {strides = array<i32>} : memref<8x128xf32, #tpu.memory_space<vmem>>, vector<8x128xf32>,
    return
  }
  func.func @transform_0(%arg0: i32) -> (i32, i32) {
    %c0_i32 = arith.constant 0 : i32
    %c0_i32_0 = arith.constant 0 : i32
    return %c0_i32, %arg0 : i32, i32
  }
  func.func @transform_1(%arg0: i32) -> (i32, i32) {
    %c0_i32 = arith.constant 0 : i32
    %c0_i32_0 = arith.constant 0 : i32
    %c0_i32_1 = arith.constant 0 : i32
    return %c0_i32, %c0_i32_0 : i32, i32
  }
  func.func @transform_2(%arg0: i32) -> (i32, i32) {
    %c0_i32 = arith.constant 0 : i32
    %c0_i32_0 = arith.constant 0 : i32
    %c0_i32_1 = arith.constant 0 : i32
    return %c0_i32, %c0_i32_0 : i32, i32
  }
  func.func @transform_3(%arg0: i32) -> (i32, i32) {
    %c0_i32 = arith.constant 0 : i32
    %c0_i32_0 = arith.constant 0 : i32
    %c0_i32_1 = arith.constant 0 : i32
    return %c0_i32, %c0_i32_0 : i32, i32
  }
  func.func @transform_4(%arg0: i32) -> (i32, i32) {
    %c0_i32 = arith.constant 0 : i32
    %c0_i32_0 = arith.constant 0 : i32
    %c0_i32_1 = arith.constant 0 : i32
    return %c0_i32, %c0_i32_0 : i32, i32
  }
  func.func @transform_5(%arg0: i32) -> (i32, i32) {
    %c0_i32 = arith.constant 0 : i32
    %c0_i32_0 = arith.constant 0 : i32
    %c0_i32_1 = arith.constant 0 : i32
    return %c0_i32, %c0_i32_0 : i32, i32
  }
  func.func @transform_6(%arg0: i32) -> (i32, i32) {
    %c0_i32 = arith.constant 0 : i32
    %c0_i32_0 = arith.constant 0 : i32
    %c0_i32_1 = arith.constant 0 : i32
    return %c0_i32, %c0_i32_0 : i32, i32
  }
  func.func @transform_7(%arg0: i32) -> (i32, i32) {
    %c0_i32 = arith.constant 0 : i32
    %c0_i32_0 = arith.constant 0 : i32
    %c0_i32_1 = arith.constant 0 : i32
    return %c0_i32, %c0_i32_0 : i32, i32
  }
  func.func @transform_8(%arg0: i32) -> (i32, i32) {
    %c0_i32 = arith.constant 0 : i32
    %c0_i32_0 = arith.constant 0 : i32
    %c0_i32_1 = arith.constant 0 : i32
    return %c0_i32, %c0_i32_0 : i32, i32
  }
  func.func @transform_9(%arg0: i32) -> (i32, i32) {
    %c0_i32 = arith.constant 0 : i32
    %c0_i32_0 = arith.constant 0 : i32
    return %c0_i32, %arg0 : i32, i32
  }
}

</mosaic_0001>

<llo_original>
// kernel: kitenet_forward.1
$region0: #{kitenet_forward.1}
  #allocation0 [shape = 'u32[]', space=smem, size = 0x4, offset = 0x4, fixed_abs, tag = 'smem constant byte address 0x4 - core index']
  #allocation1 [shape = 'u32[72,128]{1,0:T(1,128)}', space=vmem, size = 0x9000, scoped, tag = 'internal scratch']
  %s0 = inlined_call_operand.vmem [shape: bf16[16,512], index: 0, kind: input, shape index: {}]
  %s1 = inlined_call_operand.vmem [shape: bf16[8,16], index: 1, kind: input, shape index: {}]
  %s2 = inlined_call_operand.vmem [shape: bf16[16,8], index: 2, kind: input, shape index: {}]
  %s3 = inlined_call_operand.vmem [shape: bf16[32,16], index: 3, kind: input, shape index: {}]
  %s4 = inlined_call_operand.vmem [shape: bf16[16,32], index: 4, kind: input, shape index: {}]
  %s5 = inlined_call_operand.vmem [shape: bf16[16,16], index: 5, kind: input, shape index: {}]
  %s6 = inlined_call_operand.vmem [shape: bf16[12,16], index: 6, kind: input, shape index: {}]
  %s7 = inlined_call_operand.vmem [shape: bf16[8,12], index: 7, kind: input, shape index: {}]
  %s8 = inlined_call_operand.vmem [shape: f32[112,1], index: 8, kind: input, shape index: {}]
  %s9 = inlined_call_operand.vmem [shape: f32[8,512], index: 9, kind: output, shape index: {}]
  %s10 = sld [smem:[#allocation0]]
  $region110: #{kitenet_forward.1} parent=0
    _
  %s12 = ssub.s32 1, %s10
  %s13 = scalar_select 0, %s12, %s10
  $region1: #{kitenet_forward.1} parent=0
    #allocation2 [shape = 'u8[8192]{0}', space=vmem, size = 0x2000, scoped, tag = 'input window, operand 0']
    loop: start=0, step=1, limit=6
    $region2: #{kitenet_forward.1} parent=1 // loop_pre_header
      _
    $region3: #{kitenet_forward.1} parent=1 // loop_header
      %s15 = sphi 0, %s19
      %p16 = scmp.ge.s32.totalorder %s15, 6
      %s25 = sphi 0, %s27
      %s28 = sphi 0, %s25
      %s29 = sphi 0, %s28
      %s45 = sphi 0, %s29
      %s49 = sphi 0, %s49
      %s51 = sphi 0, %s49
      %s52 = sphi 0, %s51
      %s66 = sphi 0, %s52
      %s70 = sphi 0, %s70
      %s72 = sphi 0, %s70
      %s73 = sphi 0, %s72
      %s87 = sphi 0, %s73
      %s91 = sphi 0, %s91
      %s93 = sphi 0, %s91
      %s94 = sphi 0, %s93
      %s108 = sphi 0, %s94
      %s112 = sphi 0, %s112
      %s114 = sphi 0, %s112
      %s115 = sphi 0, %s114
      %s129 = sphi 0, %s115
      %s133 = sphi 0, %s133
      %s135 = sphi 0, %s133
      %s136 = sphi 0, %s135
      %s150 = sphi 0, %s136
      %s154 = sphi 0, %s154
      %s156 = sphi 0, %s154
      %s157 = sphi 0, %s156
      %s171 = sphi 0, %s157
      %s175 = sphi 0, %s175
      %s177 = sphi 0, %s175
      %s178 = sphi 0, %s177
      %s192 = sphi 0, %s178
      %s196 = sphi 0, %s196
      %s198 = sphi 0, %s196
      %s199 = sphi 0, %s198
      %s213 = sphi 0, %s199
      %s219 = sphi 0, %s221
      %s222 = sphi 0, %s219
      %s223 = sphi 0, %s222
      %s239 = sphi 0, %s223
    $region4: #{kitenet_forward.1} parent=1 // loop_header_branch
      %18 = sbr.rel (%p16) target = $region8
    $region5: #{kitenet_forward.1} parent=1 // loop_body
      %s20 = ssub.s32 %s15, 1
      %s21 = ssub.s32 %s15, 2
      %s22 = sadd.s32 %s15, 1
      %s23 = ssub.s32 %s15, %s22
      %p24 = scmp.eq.s32.totalorder %s23, 0
      %s26 = sadd.s32 %s25, 1
      %s27 = scalar_select %p24, %s25, %s26
      %p30 = pneg %p24
      %p31 = scmp.eq.s32.totalorder %s15, 3
      %p32 = por %p30, %p31
      %p33 = scmp.ne.s32.totalorder %s25, %s28
      %p34 = scmp.eq.s32.totalorder %s15, 0
      %p35 = por %p33, %p34
      %p36 = scmp.ne.s32.totalorder %s25, %s28
      %p37 = scmp.eq.s32.totalorder %s20, 3
      %p38 = por %p36, %p37
      %p39 = scmp.ne.s32.totalorder %s28, %s29
      %p40 = scmp.eq.s32.totalorder %s20, 0
      %p41 = por %p39, %p40
      %p42 = scmp.ne.s32.totalorder %s28, %s29
      %p43 = scmp.eq.s32.totalorder %s21, 3
      %p44 = por %p42, %p43
      %p46 = scmp.ne.s32.totalorder %s29, %s45
      %p47 = scmp.eq.s32.totalorder %s21, 0
      %p48 = por %p46, %p47
      %s50 = sadd.s32 %s49, 1
      %p53 = scmp.eq.s32.totalorder %s15, 3
      %p54 = scmp.ne.s32.totalorder %s49, %s51
      %p55 = scmp.eq.s32.totalorder %s15, 0
      %p56 = por %p54, %p55
      %p57 = scmp.ne.s32.totalorder %s49, %s51
      %p58 = scmp.eq.s32.totalorder %s20, 3
      %p59 = por %p57, %p58
      %p60 = scmp.ne.s32.totalorder %s51, %s52
      %p61 = scmp.eq.s32.totalorder %s20, 0
      %p62 = por %p60, %p61
      %p63 = scmp.ne.s32.totalorder %s51, %s52
      %p64 = scmp.eq.s32.totalorder %s21, 3
      %p65 = por %p63, %p64
      %p67 = scmp.ne.s32.totalorder %s52, %s66
      %p68 = scmp.eq.s32.totalorder %s21, 0
      %p69 = por %p67, %p68
      %s71 = sadd.s32 %s70, 1
      %p74 = scmp.eq.s32.totalorder %s15, 3
      %p75 = scmp.ne.s32.totalorder %s70, %s72
      %p76 = scmp.eq.s32.totalorder %s15, 0
      %p77 = por %p75, %p76
      %p78 = scmp.ne.s32.totalorder %s70, %s72
      %p79 = scmp.eq.s32.totalorder %s20, 3
      %p80 = por %p78, %p79
      %p81 = scmp.ne.s32.totalorder %s72, %s73
      %p82 = scmp.eq.s32.totalorder %s20, 0
      %p83 = por %p81, %p82
      %p84 = scmp.ne.s32.totalorder %s72, %s73
      %p85 = scmp.eq.s32.totalorder %s21, 3
      %p86 = por %p84, %p85
      %p88 = scmp.ne.s32.totalorder %s73, %s87
      %p89 = scmp.eq.s32.totalorder %s21, 0
      %p90 = por %p88, %p89
      %s92 = sadd.s32 %s91, 1
      %p95 = scmp.eq.s32.totalorder %s15, 3
      %p96 = scmp.ne.s32.totalorder %s91, %s93
      %p97 = scmp.eq.s32.totalorder %s15, 0
      %p98 = por %p96, %p97
      %p99 = scmp.ne.s32.totalorder %s91, %s93
      %p100 = scmp.eq.s32.totalorder %s20, 3
      %p101 = por %p99, %p100
      %p102 = scmp.ne.s32.totalorder %s93, %s94
      %p103 = scmp.eq.s32.totalorder %s20, 0
      %p104 = por %p102, %p103
      %p105 = scmp.ne.s32.totalorder %s93, %s94
      %p106 = scmp.eq.s32.totalorder %s21, 3
      %p107 = por %p105, %p106
      %p109 = scmp.ne.s32.totalorder %s94, %s108
      %p110 = scmp.eq.s32.totalorder %s21, 0
      %p111 = por %p109, %p110
      %s113 = sadd.s32 %s112, 1
      %p116 = scmp.eq.s32.totalorder %s15, 3
      %p117 = scmp.ne.s32.totalorder %s112, %s114
      %p118 = scmp.eq.s32.totalorder %s15, 0
      %p119 = por %p117, %p118
      %p120 = scmp.ne.s32.totalorder %s112, %s114
      %p121 = scmp.eq.s32.totalorder %s20, 3
      %p122 = por %p120, %p121
      %p123 = scmp.ne.s32.totalorder %s114, %s115
      %p124 = scmp.eq.s32.totalorder %s20, 0
      %p125 = por %p123, %p124
      %p126 = scmp.ne.s32.totalorder %s114, %s115
      %p127 = scmp.eq.s32.totalorder %s21, 3
      %p128 = por %p126, %p127
      %p130 = scmp.ne.s32.totalorder %s115, %s129
      %p131 = scmp.eq.s32.totalorder %s21, 0
      %p132 = por %p130, %p131
      %s134 = sadd.s32 %s133, 1
      %p137 = scmp.eq.s32.totalorder %s15, 3
      %p138 = scmp.ne.s32.totalorder %s133, %s135
      %p139 = scmp.eq.s32.totalorder %s15, 0
      %p140 = por %p138, %p139
      %p141 = scmp.ne.s32.totalorder %s133, %s135
      %p142 = scmp.eq.s32.totalorder %s20, 3
      %p143 = por %p141, %p142
      %p144 = scmp.ne.s32.totalorder %s135, %s136
      %p145 = scmp.eq.s32.totalorder %s20, 0
      %p146 = por %p144, %p145
      %p147 = scmp.ne.s32.totalorder %s135, %s136
      %p148 = scmp.eq.s32.totalorder %s21, 3
      %p149 = por %p147, %p148
      %p151 = scmp.ne.s32.totalorder %s136, %s150
      %p152 = scmp.eq.s32.totalorder %s21, 0
      %p153 = por %p151, %p152
      %s155 = sadd.s32 %s154, 1
      %p158 = scmp.eq.s32.totalorder %s15, 3
      %p159 = scmp.ne.s32.totalorder %s154, %s156
      %p160 = scmp.eq.s32.totalorder %s15, 0
      %p161 = por %p159, %p160
      %p162 = scmp.ne.s32.totalorder %s154, %s156
      %p163 = scmp.eq.s32.totalorder %s20, 3
      %p164 = por %p162, %p163
      %p165 = scmp.ne.s32.totalorder %s156, %s157
      %p166 = scmp.eq.s32.totalorder %s20, 0
      %p167 = por %p165, %p166
      %p168 = scmp.ne.s32.totalorder %s156, %s157
      %p169 = scmp.eq.s32.totalorder %s21, 3
      %p170 = por %p168, %p169
      %p172 = scmp.ne.s32.totalorder %s157, %s171
      %p173 = scmp.eq.s32.totalorder %s21, 0
      %p174 = por %p172, %p173
      %s176 = sadd.s32 %s175, 1
      %p179 = scmp.eq.s32.totalorder %s15, 3
      %p180 = scmp.ne.s32.totalorder %s175, %s177
      %p181 = scmp.eq.s32.totalorder %s15, 0
      %p182 = por %p180, %p181
      %p183 = scmp.ne.s32.totalorder %s175, %s177
      %p184 = scmp.eq.s32.totalorder %s20, 3
      %p185 = por %p183, %p184
      %p186 = scmp.ne.s32.totalorder %s177, %s178
      %p187 = scmp.eq.s32.totalorder %s20, 0
      %p188 = por %p186, %p187
      %p189 = scmp.ne.s32.totalorder %s177, %s178
      %p190 = scmp.eq.s32.totalorder %s21, 3
      %p191 = por %p189, %p190
      %p193 = scmp.ne.s32.totalorder %s178, %s192
      %p194 = scmp.eq.s32.totalorder %s21, 0
      %p195 = por %p193, %p194
      %s197 = sadd.s32 %s196, 1
      %p200 = scmp.eq.s32.totalorder %s15, 3
      %p201 = scmp.ne.s32.totalorder %s196, %s198
      %p202 = scmp.eq.s32.totalorder %s15, 0
      %p203 = por %p201, %p202
      %p204 = scmp.ne.s32.totalorder %s196, %s198
      %p205 = scmp.eq.s32.totalorder %s20, 3
      %p206 = por %p204, %p205
      %p207 = scmp.ne.s32.totalorder %s198, %s199
      %p208 = scmp.eq.s32.totalorder %s20, 0
      %p209 = por %p207, %p208
      %p210 = scmp.ne.s32.totalorder %s198, %s199
      %p211 = scmp.eq.s32.totalorder %s21, 3
      %p212 = por %p210, %p211
      %p214 = scmp.ne.s32.totalorder %s199, %s213
      %p215 = scmp.eq.s32.totalorder %s21, 0
      %p216 = por %p214, %p215
      %s217 = ssub.s32 %s15, %s22
      %p218 = scmp.eq.s32.totalorder %s217, 0
      %s220 = sadd.s32 %s219, 1
      %s221 = scalar_select %p218, %s219, %s220
      %p224 = pneg %p218
      %p225 = scmp.eq.s32.totalorder %s15, 3
      %p226 = por %p224, %p225
      %p227 = scmp.ne.s32.totalorder %s219, %s222
      %p228 = scmp.eq.s32.totalorder %s15, 0
      %p229 = por %p227, %p228
      %p230 = scmp.ne.s32.totalorder %s219, %s222
      %p231 = scmp.eq.s32.totalorder %s20, 3
      %p232 = por %p230, %p231
      %p233 = scmp.ne.s32.totalorder %s222, %s223
      %p234 = scmp.eq.s32.totalorder %s20, 0
      %p235 = por %p233, %p234
      %p236 = scmp.ne.s32.totalorder %s222, %s223
      %p237 = scmp.eq.s32.totalorder %s21, 3
      %p238 = por %p236, %p237
      %p240 = scmp.ne.s32.totalorder %s223, %s239
      %p241 = scmp.eq.s32.totalorder %s21, 0
      %p242 = por %p240, %p241
      %p243 = scmp.le.s32.totalorder 1, %s15
      %p244 = scmp.lt.s32.totalorder %s15, 5
      %p245 = pnand %p243, %p244
      %p246 = pneg %p245
      // Predicated region
      $region9: #{kitenet_forward.1} parent=5 // pred_check
        _
      $region10: #{kitenet_forward.1} parent=5 // pred_check_branch
        %248 = sbr.rel (%p245) target = $region12
      $region11: #{kitenet_forward.1} parent=5 // pred_region
        %s249 = ssub.s32 %s15, 1
        // Predicated region
        $region13: #{kitenet_forward.1} parent=11 // pred_check
          %p250 = pneg %p62
        $region14: #{kitenet_forward.1} parent=11 // pred_check_branch
          %252 = sbr.rel (%p250) target = $region16
        $region15: #{kitenet_forward.1} parent=11 // pred_region
          _
        $region16: #{kitenet_forward.1} parent=11 // pred_fallthru
          _
        // Predicated region
        $region17: #{kitenet_forward.1} parent=11 // pred_check
          %p253 = pneg %p83
        $region18: #{kitenet_forward.1} parent=11 // pred_check_branch
          %255 = sbr.rel (%p253) target = $region20
        $region19: #{kitenet_forward.1} parent=11 // pred_region
          _
        $region20: #{kitenet_forward.1} parent=11 // pred_fallthru
          _
        // Predicated region
        $region21: #{kitenet_forward.1} parent=11 // pred_check
          %p256 = pneg %p104
        $region22: #{kitenet_forward.1} parent=11 // pred_check_branch
          %258 = sbr.rel (%p256) target = $region24
        $region23: #{kitenet_forward.1} parent=11 // pred_region
          _
        $region24: #{kitenet_forward.1} parent=11 // pred_fallthru
          _
        // Predicated region
        $region25: #{kitenet_forward.1} parent=11 // pred_check
          %p259 = pneg %p125
        $region26: #{kitenet_forward.1} parent=11 // pred_check_branch
          %261 = sbr.rel (%p259) target = $region28
        $region27: #{kitenet_forward.1} parent=11 // pred_region
          _
        $region28: #{kitenet_forward.1} parent=11 // pred_fallthru
          _
        // Predicated region
        $region29: #{kitenet_forward.1} parent=11 // pred_check
          %p262 = pneg %p146
        $region30: #{kitenet_forward.1} parent=11 // pred_check_branch
          %264 = sbr.rel (%p262) target = $region32
        $region31: #{kitenet_forward.1} parent=11 // pred_region
          _
        $region32: #{kitenet_forward.1} parent=11 // pred_fallthru
          _
        // Predicated region
        $region33: #{kitenet_forward.1} parent=11 // pred_check
          %p265 = pneg %p167
        $region34: #{kitenet_forward.1} parent=11 // pred_check_branch
          %267 = sbr.rel (%p265) target = $region36
        $region35: #{kitenet_forward.1} parent=11 // pred_region
          _
        $region36: #{kitenet_forward.1} parent=11 // pred_fallthru
          _
        // Predicated region
        $region37: #{kitenet_forward.1} parent=11 // pred_check
          %p268 = pneg %p188
        $region38: #{kitenet_forward.1} parent=11 // pred_check_branch
          %270 = sbr.rel (%p268) target = $region40
        $region39: #{kitenet_forward.1} parent=11 // pred_region
          _
        $region40: #{kitenet_forward.1} parent=11 // pred_fallthru
          _
        // Predicated region
        $region41: #{kitenet_forward.1} parent=11 // pred_check
          %p271 = pneg %p209
        $region42: #{kitenet_forward.1} parent=11 // pred_check_branch
          %273 = sbr.rel (%p271) target = $region44
        $region43: #{kitenet_forward.1} parent=11 // pred_region
          _
        $region44: #{kitenet_forward.1} parent=11 // pred_fallthru
          _
      $region12: #{kitenet_forward.1} parent=5 // pred_fallthru
        _
      %p274 = scmp.lt.s32.totalorder %s15, 4
      // Predicated region
      $region45: #{kitenet_forward.1} parent=5 // pred_check
        %p275 = pneg %p274
      $region46: #{kitenet_forward.1} parent=5 // pred_check_branch
        %277 = sbr.rel (%p275) target = $region48
      $region47: #{kitenet_forward.1} parent=5 // pred_region
        // Predicated region
        $region49: #{kitenet_forward.1} parent=47 // pred_check
          %p278 = pneg %p35
        $region50: #{kitenet_forward.1} parent=47 // pred_check_branch
          %280 = sbr.rel (%p278) target = $region52
        $region51: #{kitenet_forward.1} parent=47 // pred_region
          %s281 = sand.u32 %s25, 1
          %s282 = sand.u32 %s25, 1
          %s283 = smul.addr %s282, 8
          %s284 = scalar_lea.vmem [#allocation2], %s283
          %s285 = smul.addr %s15, 4
          %s286 = scalar_lea.vmem %s0, %s285
          // Predicated region
          $region53: #{kitenet_forward.1} parent=51 // pred_check
            _
          $region54: #{kitenet_forward.1} parent=51 // pred_check_branch
            %288 = sbr.rel (0) target = $region56
          $region55: #{kitenet_forward.1} parent=51 // pred_region
            // Predicated region
            $region57: #{kitenet_forward.1} parent=55 // pred_check
              _
            $region58: #{kitenet_forward.1} parent=55 // pred_check_branch
              %290 = sbr.rel target = $region60
            $region59: #{kitenet_forward.1} parent=55 // pred_region
              // Predicated region
              $region72: #{kitenet_forward.1} parent=59 // pred_check
                _
              $region73: #{kitenet_forward.1} parent=59 // pred_check_branch
                %308 = sbr.rel (0) target = $region75
              $region74: #{kitenet_forward.1} parent=59 // pred_region
                loop: start=0, step=1, limit=1
                $region76: #{kitenet_forward.1} parent=74 // loop_pre_header
                  _
                $region77: #{kitenet_forward.1} parent=74 // loop_header
                  %s310 = sphi 0, %s314
                  %p311 = scmp.ge.s32.totalorder %s310, 1
                  %s315 = sphi %s286, %s286
                  %s316 = sphi %s284, %s284
                $region78: #{kitenet_forward.1} parent=74 // loop_header_branch
                  %313 = sbr.rel (%p311) target = $region82
                $region79: #{kitenet_forward.1} parent=74 // loop_body
                  _
                $region80: #{kitenet_forward.1} parent=74 // loop_footer
                  %s314 = sadd.s32 1, %s310
                $region81: #{kitenet_forward.1} parent=74 // loop_footer_branch
                  %309 = sbr.rel target = $region77
                $region82: #{kitenet_forward.1} parent=74 // loop_exit
                  _
                %s318 = ssub.s32 16, 1
                loop: start=0, step=1, limit=1
                $region83: #{kitenet_forward.1} parent=74 // loop_pre_header
                  _
                $region84: #{kitenet_forward.1} parent=74 // loop_header
                  %s320 = sphi 0, %s324
                  %p321 = scmp.ge.s32.totalorder %s320, 1
                  %s325 = sphi %s286, %s286
                  %s326 = sphi %s284, %s284
                $region85: #{kitenet_forward.1} parent=74 // loop_header_branch
                  %323 = sbr.rel (%p321) target = $region89
                $region86: #{kitenet_forward.1} parent=74 // loop_body
                  %v327 = vld [vmem:[%s325] sm:%s318]
                  %328 = vst [vmem:[%s326] sm:%s318] %v327
                  %v329 = vld [vmem:[%s325 + $0x10] sm:%s318]
                  %330 = vst [vmem:[%s326 + $0x4] sm:%s318] %v329
                $region87: #{kitenet_forward.1} parent=74 // loop_footer
                  %s324 = sadd.s32 1, %s320
                $region88: #{kitenet_forward.1} parent=74 // loop_footer_branch
                  %319 = sbr.rel target = $region84
                $region89: #{kitenet_forward.1} parent=74 // loop_exit
                  _
              $region75: #{kitenet_forward.1} parent=59 // pred_fallthru
                _
            $region60: #{kitenet_forward.1} parent=55 // pred_fallthru
              _
            // Predicated region
            $region61: #{kitenet_forward.1} parent=55 // pred_check
              _
            $region62: #{kitenet_forward.1} parent=55 // pred_check_branch
              %292 = sbr.rel (0) target = $region64
            $region63: #{kitenet_forward.1} parent=55 // pred_region
              %s294 = ssub.s32 16, 1
              loop: start=0, step=1, limit=1
              $region65: #{kitenet_forward.1} parent=63 // loop_pre_header
                _
              $region66: #{kitenet_forward.1} parent=63 // loop_header
                %s296 = sphi 0, %s300
                %p297 = scmp.ge.s32.totalorder %s296, 1
                %s301 = sphi %s286, %s286
                %s302 = sphi %s284, %s284
              $region67: #{kitenet_forward.1} parent=63 // loop_header_branch
                %299 = sbr.rel (%p297) target = $region71
              $region68: #{kitenet_forward.1} parent=63 // loop_body
                %v303 = vld [vmem:[%s301] sm:%s294]
                %304 = vst [vmem:[%s302] sm:%s294] %v303
                %v305 = vld [vmem:[%s301 + $0x10] sm:%s294]
                %306 = vst [vmem:[%s302 + $0x4] sm:%s294] %v305
              $region69: #{kitenet_forward.1} parent=63 // loop_footer
                %s300 = sadd.s32 1, %s296
              $region70: #{kitenet_forward.1} parent=63 // loop_footer_branch
                %295 = sbr.rel target = $region66
              $region71: #{kitenet_forward.1} parent=63 // loop_exit
                _
            $region64: #{kitenet_forward.1} parent=55 // pred_fallthru
              _
          $region56: #{kitenet_forward.1} parent=51 // pred_fallthru
            _
          %331 = vnop
        $region52: #{kitenet_forward.1} parent=47 // pred_fallthru
          _
      $region48: #{kitenet_forward.1} parent=5 // pred_fallthru
        _
      %p332 = scmp.le.s32.totalorder 1, %s15
      %p333 = scmp.lt.s32.totalorder %s15, 5
      %p334 = pnand %p332, %p333
      %p335 = pneg %p334
      // Predicated region
      $region90: #{kitenet_forward.1} parent=5 // pred_check
        _
      $region91: #{kitenet_forward.1} parent=5 // pred_check_branch
        %337 = sbr.rel (%p334) target = $region93
      $region92: #{kitenet_forward.1} parent=5 // pred_region
        %s338 = ssub.s32 %s15, 1
        %s339 = sand.u32 %s28, 1
        %s340 = sand.u32 %s28, 1
        %s341 = smul.addr %s340, 8
        %s342 = scalar_lea.vmem [#allocation2], %s341
        // Predicated region
        $region94: #{kitenet_forward.1} parent=92 // pred_check
          %p343 = pneg %p41
        $region95: #{kitenet_forward.1} parent=92 // pred_check_branch
          %345 = sbr.rel (%p343) target = $region97
        $region96: #{kitenet_forward.1} parent=92 // pred_region
          _
        $region97: #{kitenet_forward.1} parent=92 // pred_fallthru
          _
        %s346 = sand.u32 %s28, 1
        %s347 = sand.u32 %s28, 1
        %s348 = smul.addr %s347, 8
        %s349 = scalar_lea.vmem [#allocation2], %s348
        %p350 = pneg %p41
        %p351 = pneg %p38
        %p352 = pneg %p62
        %p353 = pneg %p59
        %p354 = pneg %p83
        %p355 = pneg %p80
        %p356 = pneg %p104
        %p357 = pneg %p101
        %p358 = pneg %p125
        %p359 = pneg %p122
        %p360 = pneg %p146
        %p361 = pneg %p143
        %p362 = pneg %p167
        %p363 = pneg %p164
        %p364 = pneg %p188
        %p365 = pneg %p185
        %p366 = pneg %p209
        %p367 = pneg %p206
        %p368 = pneg %p235
        %p369 = pneg %p232
        %p370 = scmp.lt.s32.totalorder %s20, 3
        %s371 = scalar_select %p370, %s20, 3
        %s372 = smul.addr %s371, 8
        %s373 = scalar_lea.vmem %s9, %s372
        %p374 = scmp.lt.s32.totalorder %s20, 3
        %s375 = scalar_select %p374, %s20, 3
        %s376 = smul.addr %s375, 8
        %s377 = scalar_lea.vmem %s9, %s376
        %v379 = vld [vmem:[%s8] sm:$0xff]
        %v380 = vld [vmem:[%s8 + $0x8] sm:$0xff]
        %v381 = vld [vmem:[%s8 + $0x10] sm:$0xff]
        %v382 = vld [vmem:[%s8 + $0x18] sm:$0xff]
        %v383 = vld [vmem:[%s8 + $0x20] sm:$0xff]
        %v384 = vld [vmem:[%s8 + $0x28] sm:$0xff]
        %v385 = vld [vmem:[%s8 + $0x30] sm:$0xff]
        %v386 = vld [vmem:[%s8 + $0x38] sm:$0xff]
        %v387 = vld [vmem:[%s8 + $0x40] sm:$0xff]
        %v388 = vld [vmem:[%s8 + $0x48] sm:$0xff]
        %v389 = vld [vmem:[%s8 + $0x50] sm:$0xff]
        %v390 = vld [vmem:[%s8 + $0x58] sm:$0xff]
        %v391 = vld [vmem:[%s8 + $0x60] sm:$0xff]
        %v392 = vld [vmem:[%s8 + $0x68] sm:$0xff]
        %v393 = vld [vmem:[%s342] sm:$0xf]
        %v394 = vld [vmem:[%s342 + $0x4] sm:$0xf]
        %v395 = vld [vmem:[%s1] sm:$0xf]
        %397 = vset.pattern.permute.xlu0 0
        %398 = vperm.xlu0 %397, %v379
        %v399 = vpop.permute.xlu0 %398
        %v403 = vunpack.c.l.b16 %v393
        %v404 = vunpack.c.l.b16 %v394
        %v405 = vpack.c.b16 %v404, %v403
        %vm407 = vcmask 130048
        %v409 = vsel %vm407, %v395, 0
        %411 = vmatpush.bf16.msra.mxu0 0
        %412 = vmatpush.bf16.msra.mxu0 0
        %413 = vmatpush.bf16.msra.mxu0 0
        %414 = vmatpush.bf16.msra.mxu0 0
        %415 = vmatpush.bf16.msra.mxu0 0
        %416 = vmatpush.bf16.msra.mxu0 0
        %417 = vmatpush.bf16.msra.mxu0 0
        %418 = vmatpush.bf16.msra.mxu0 %v405
        %419 = vmatmul.bf16.gmra.mxu0 %v409
        %v420 = vpop.f32.mrf.mxu0
        %v421 = vadd.f32 %v399, %v420
        %v422 = vpop.f32.mrf.mxu0
        %423 = vdwg.mxu0
        %v424 = vmax.f32 %v421, 0.0
        %v425 = vpack.c.bf16 %v424, %v424
        %v426 = vld [vmem:[%s2] sm:$0xf]
        %v427 = vld [vmem:[%s2 + $0x4] sm:$0xf]
        %429 = vset.pattern.permute.xlu0 0
        %430 = vperm.xlu0 %429, %v380
        %v431 = vpop.permute.xlu0 %430
        %434 = vset.pattern.permute.xlu0 0
        %435 = vperm.xlu0 %434, %v381
        %v436 = vpop.permute.xlu0 %435
        %v440 = vunpack.c.l.b16 %v426
        %v441 = vunpack.c.l.b16 %v427
        %v442 = vpack.c.b16 %v441, %v440
        %vm443 = vcmask 64512
        %v445 = vsel %vm443, %v442, 0
        %vm447 = vcmask 1043456
        %v449 = vsel %vm447, %v425, 0
        %451 = vmatpush.bf16.msra.mxu0 0
        %452 = vmatpush.bf16.msra.mxu0 0
        %453 = vmatpush.bf16.msra.mxu0 0
        %454 = vmatpush.bf16.msra.mxu0 0
        %455 = vmatpush.bf16.msra.mxu0 0
        %456 = vmatpush.bf16.msra.mxu0 0
        %457 = vmatpush.bf16.msra.mxu0 0
        %458 = vmatpush.bf16.msra.mxu0 %v449
        %459 = vmatmul.bf16.gmra.mxu0 %v445
        %v460 = vpop.f32.mrf.mxu0
        %v461 = vadd.f32 %v431, %v460
        %v462 = vpop.f32.mrf.mxu0
        %v463 = vadd.f32 %v436, %v462
        %464 = vdwg.mxu0
        %v465 = vmax.f32 %v461, 0.0
        %v466 = vmax.f32 %v463, 0.0
        %v467 = vpack.c.bf16 %v466, %v465
        %v468 = vld [vmem:[%s3] sm:$0xf]
        %v469 = vld [vmem:[%s3 + $0x4] sm:$0xf]
        %v470 = vld [vmem:[%s3 + $0x8] sm:$0xf]
        %v471 = vld [vmem:[%s3 + $0xc] sm:$0xf]
        %473 = vset.pattern.permute.xlu0 0
        %474 = vperm.xlu0 %473, %v382
        %v475 = vpop.permute.xlu0 %474
        %478 = vset.pattern.permute.xlu0 0
        %479 = vperm.xlu0 %478, %v383
        %v480 = vpop.permute.xlu0 %479
        %483 = vset.pattern.permute.xlu0 0
        %484 = vperm.xlu0 %483, %v384
        %v485 = vpop.permute.xlu0 %484
        %488 = vset.pattern.permute.xlu0 0
        %489 = vperm.xlu0 %488, %v385
        %v490 = vpop.permute.xlu0 %489
        %v496 = vunpack.c.l.b16 %v468
        %v497 = vunpack.c.l.b16 %v469
        %v498 = vunpack.c.l.b16 %v470
        %v499 = vunpack.c.l.b16 %v471
        %v500 = vpack.c.b16 %v497, %v496
        %v501 = vpack.c.b16 %v499, %v498
        %v503 = vsel %vm407, %v500, 0
        %v506 = vsel %vm407, %v501, 0
        %508 = vmatpush.bf16.msra.mxu0 0
        %509 = vmatpush.bf16.msra.mxu0 0
        %510 = vmatpush.bf16.msra.mxu0 0
        %511 = vmatpush.bf16.msra.mxu0 0
        %512 = vmatpush.bf16.msra.mxu0 0
        %513 = vmatpush.bf16.msra.mxu0 0
        %514 = vmatpush.bf16.msra.mxu0 0
        %515 = vmatpush.bf16.msra.mxu0 %v467
        %516 = vmatmul.bf16.gmra.mxu0 %v503
        %v517 = vpop.f32.mrf.mxu0
        %v518 = vadd.f32 %v475, %v517
        %v519 = vpop.f32.mrf.mxu0
        %v520 = vadd.f32 %v480, %v519
        %521 = vmatmul.bf16.gmra.mxu0 %v506
        %v522 = vpop.f32.mrf.mxu0
        %v523 = vadd.f32 %v485, %v522
        %v524 = vpop.f32.mrf.mxu0
        %v525 = vadd.f32 %v490, %v524
        %526 = vdwg.mxu0
        %v527 = vmax.f32 %v518, 0.0
        %v528 = vmax.f32 %v520, 0.0
        %v529 = vmax.f32 %v523, 0.0
        %v530 = vmax.f32 %v525, 0.0
        %v531 = vpack.c.bf16 %v528, %v527
        %v532 = vpack.c.bf16 %v530, %v529
        %v533 = vld [vmem:[%s4] sm:$0xf]
        %v534 = vld [vmem:[%s4 + $0x4] sm:$0xf]
        %536 = vset.pattern.permute.xlu0 0
        %537 = vperm.xlu0 %536, %v386
        %v538 = vpop.permute.xlu0 %537
        %541 = vset.pattern.permute.xlu0 0
        %542 = vperm.xlu0 %541, %v387
        %v543 = vpop.permute.xlu0 %542
        %v547 = vunpack.c.l.b16 %v533
        %v548 = vunpack.c.l.b16 %v534
        %v549 = vpack.c.b16 %v548, %v547
        %vm550 = vcmask 261120
        %v552 = vsel %vm550, %v549, 0
        %554 = vmatpush.bf16.msra.mxu0 0
        %555 = vmatpush.bf16.msra.mxu0 0
        %556 = vmatpush.bf16.msra.mxu0 0
        %557 = vmatpush.bf16.msra.mxu0 0
        %558 = vmatpush.bf16.msra.mxu0 0
        %559 = vmatpush.bf16.msra.mxu0 0
        %560 = vmatpush.bf16.msra.mxu0 %v532
        %561 = vmatpush.bf16.msra.mxu0 %v531
        %562 = vmatmul.bf16.gmra.mxu0 %v552
        %v563 = vpop.f32.mrf.mxu0
        %v564 = vadd.f32 %v538, %v563
        %v565 = vpop.f32.mrf.mxu0
        %v566 = vadd.f32 %v543, %v565
        %567 = vdwg.mxu0
        %v568 = vmax.f32 %v564, 0.0
        %v569 = vmax.f32 %v566, 0.0
        %v570 = vpack.c.bf16 %v569, %v568
        %v571 = vld [vmem:[%s5] sm:$0xf]
        %v572 = vld [vmem:[%s5 + $0x4] sm:$0xf]
        %574 = vset.pattern.permute.xlu0 0
        %575 = vperm.xlu0 %574, %v388
        %v576 = vpop.permute.xlu0 %575
        %579 = vset.pattern.permute.xlu0 0
        %580 = vperm.xlu0 %579, %v389
        %v581 = vpop.permute.xlu0 %580
        %v585 = vunpack.c.l.b16 %v571
        %v586 = vunpack.c.l.b16 %v572
        %v587 = vpack.c.b16 %v586, %v585
        %v589 = vsel %vm407, %v587, 0
        %591 = vmatpush.bf16.msra.mxu0 0
        %592 = vmatpush.bf16.msra.mxu0 0
        %593 = vmatpush.bf16.msra.mxu0 0
        %594 = vmatpush.bf16.msra.mxu0 0
        %595 = vmatpush.bf16.msra.mxu0 0
        %596 = vmatpush.bf16.msra.mxu0 0
        %597 = vmatpush.bf16.msra.mxu0 0
        %598 = vmatpush.bf16.msra.mxu0 %v570
        %599 = vmatmul.bf16.gmra.mxu0 %v589
        %v600 = vpop.f32.mrf.mxu0
        %v601 = vadd.f32 %v576, %v600
        %v602 = vpop.f32.mrf.mxu0
        %v603 = vadd.f32 %v581, %v602
        %604 = vdwg.mxu0
        %v605 = vmax.f32 %v601, 0.0
        %v606 = vmax.f32 %v603, 0.0
        %v607 = vpack.c.bf16 %v606, %v605
        %v608 = vld [vmem:[%s6] sm:$0xf]
        %v609 = vld [vmem:[%s6 + $0x4] sm:$0x3]
        %611 = vset.pattern.permute.xlu0 0
        %612 = vperm.xlu0 %611, %v390
        %v613 = vpop.permute.xlu0 %612
        %616 = vset.pattern.permute.xlu0 0
        %617 = vperm.xlu0 %616, %v391
        %v618 = vpop.permute.xlu0 %617
        %v622 = vunpack.c.l.b16 %v608
        %v623 = vunpack.c.l.b16 %v609
        %v624 = vpack.c.b16 %v623, %v622
        %v626 = vsel %vm407, %v624, 0
        %628 = vmatpush.bf16.msra.mxu0 0
        %629 = vmatpush.bf16.msra.mxu0 0
        %630 = vmatpush.bf16.msra.mxu0 0
        %631 = vmatpush.bf16.msra.mxu0 0
        %632 = vmatpush.bf16.msra.mxu0 0
        %633 = vmatpush.bf16.msra.mxu0 0
        %634 = vmatpush.bf16.msra.mxu0 0
        %635 = vmatpush.bf16.msra.mxu0 %v607
        %636 = vmatmul.bf16.gmra.mxu0 %v626
        %v637 = vpop.f32.mrf.mxu0
        %v638 = vadd.f32 %v613, %v637
        %v639 = vpop.f32.mrf.mxu0
        %v640 = vadd.f32 %v618, %v639
        %641 = vdwg.mxu0
        %v642 = vmax.f32 %v638, 0.0
        %v643 = vmax.f32 %v640, 0.0
        %v644 = vpack.c.bf16 %v643, %v642
        %v645 = vld [vmem:[%s7] sm:$0xf]
        %647 = vset.pattern.permute.xlu0 0
        %648 = vperm.xlu0 %647, %v392
        %v649 = vpop.permute.xlu0 %648
        %vm651 = vcmask 97280
        %v653 = vsel %vm651, %v645, 0
        %vm655 = vcmask 1045504
        %v657 = vsel %vm655, %v644, 0
        %659 = vmatpush.bf16.msra.mxu0 0
        %660 = vmatpush.bf16.msra.mxu0 0
        %661 = vmatpush.bf16.msra.mxu0 0
        %662 = vmatpush.bf16.msra.mxu0 0
        %663 = vmatpush.bf16.msra.mxu0 0
        %664 = vmatpush.bf16.msra.mxu0 0
        %665 = vmatpush.bf16.msra.mxu0 0
        %666 = vmatpush.bf16.msra.mxu0 %v657
        %667 = vmatmul.bf16.gmra.mxu0 %v653
        %v668 = vpop.f32.mrf.mxu0
        %v669 = vadd.f32 %v649, %v668
        %v670 = vpop.f32.mrf.mxu0
        %671 = vdwg.mxu0
        %672 = vst [vmem:[%s377] sm:$0xff] %v669
        %p673 = scmp.lt.s32.totalorder %s20, 3
        %s674 = scalar_select %p673, %s20, 3
        %s675 = smul.addr %s674, 8
        %s676 = scalar_lea.vmem %s9, %s675
        // Predicated region
        $region98: #{kitenet_forward.1} parent=92 // pred_check
          %p677 = pneg %p232
        $region99: #{kitenet_forward.1} parent=92 // pred_check_branch
          %679 = sbr.rel (%p677) target = $region101
        $region100: #{kitenet_forward.1} parent=92 // pred_region
          _
        $region101: #{kitenet_forward.1} parent=92 // pred_fallthru
          _
      $region93: #{kitenet_forward.1} parent=5 // pred_fallthru
        _
      %p680 = scmp.le.s32.totalorder 2, %s15
      // Predicated region
      $region102: #{kitenet_forward.1} parent=5 // pred_check
        %p681 = pneg %p680
      $region103: #{kitenet_forward.1} parent=5 // pred_check_branch
        %683 = sbr.rel (%p681) target = $region105
      $region104: #{kitenet_forward.1} parent=5 // pred_region
        %s684 = ssub.s32 %s15, 2
        // Predicated region
        $region106: #{kitenet_forward.1} parent=104 // pred_check
          %p685 = pneg %p238
        $region107: #{kitenet_forward.1} parent=104 // pred_check_branch
          %687 = sbr.rel (%p685) target = $region109
        $region108: #{kitenet_forward.1} parent=104 // pred_region
          %p688 = scmp.lt.s32.totalorder %s21, 3
          %s689 = scalar_select %p688, %s21, 3
          %s690 = smul.addr %s689, 8
          %s691 = scalar_lea.vmem %s9, %s690
        $region109: #{kitenet_forward.1} parent=104 // pred_fallthru
          _
      $region105: #{kitenet_forward.1} parent=5 // pred_fallthru
        _
    $region6: #{kitenet_forward.1} parent=1 // loop_footer
      %s19 = sadd.s32 1, %s15
    $region7: #{kitenet_forward.1} parent=1 // loop_footer_branch
      %14 = sbr.rel target = $region3
    $region8: #{kitenet_forward.1} parent=1 // loop_exit
      _

</llo_original>
